<compile_context>
chip_gen: v7x
topology: tpu7x:2x2x1
jax: 0.10.0
libtpu: 0.0.40
codegen_flags: <defaults>
</compile_context>

<pallas_src>
import jax
import jax.numpy as jnp
from jax.experimental import pallas as pl
from jax.experimental.pallas import tpu as pltpu

B = 512        # batch (many env/time steps stacked per call)
TILE_B = 128   # rows per grid step (multiple of 8 sublanes)
OBS_DIM = 64   # flattened observation dim
ENC_DIM = 32   # encoder output dim
HID_DIM = 32   # base_net hidden dim
ACT_DIM = 8    # base_net output (action) dim
W_COLS = max(ENC_DIM, HID_DIM, ACT_DIM)   # common lane width of packed blobs
EPS = 1e-8
CLIP = 10.0

# Row offsets inside the packed weight blob (all multiples of 8 -> sublane
# aligned, static slices are free).
_W_ENC_ROW = 0
_W1_ROW = OBS_DIM
_W2_ROW = OBS_DIM + ENC_DIM
_W_ROWS = OBS_DIM + ENC_DIM + HID_DIM     # 128


def _wrapper_kernel(x_ref, w_ref, vec_ref, out_ref):
    # x tile: (TILE_B, OBS_DIM)
    x = x_ref[...]

    # Static slices of the packed weight blob (zero runtime cost).
    w_enc = w_ref[_W_ENC_ROW:_W_ENC_ROW + OBS_DIM, :]   # (OBS_DIM, ENC_DIM)
    w1 = w_ref[_W1_ROW:_W1_ROW + ENC_DIM, :]            # (ENC_DIM, HID_DIM)
    w2 = w_ref[_W2_ROW:_W2_ROW + HID_DIM, :]            # (HID_DIM, W_COLS), cols >= ACT_DIM are 0

    # Packed 1-row vectors.
    b_enc = vec_ref[0:1, :]        # (1, ENC_DIM)
    scaled_mean = vec_ref[1:2, :]  # mean * inv_std
    inv_std = vec_ref[2:3, :]      # rsqrt(var + eps), precomputed host-side
    b1 = vec_ref[3:4, :]           # (1, HID_DIM)
    b2 = vec_ref[4:5, :]           # (1, W_COLS), cols >= ACT_DIM are 0

    # encoder: Linear + ReLU
    enc = jnp.dot(x, w_enc, preferred_element_type=jnp.float32) + b_enc
    enc = jnp.maximum(enc, 0.0)

    # normalizer: (enc - mean) * inv_std == enc*inv_std - mean*inv_std, clipped
    norm = jnp.clip(enc * inv_std - scaled_mean, -CLIP, CLIP)

    # base_net: tanh MLP -> linear head (padded columns of w2/b2 are zero)
    h1 = jnp.tanh(jnp.dot(norm, w1, preferred_element_type=jnp.float32) + b1)
    out = jnp.dot(h1, w2, preferred_element_type=jnp.float32) + b2   # (TILE_B, W_COLS)

    out_ref[...] = out[:, :ACT_DIM].astype(out_ref.dtype)


def pack_params(params):
    """Pack the 8 small parameter arrays into 2 lane/sublane-aligned blobs and
    fold the normalizer stats into (inv_std, scaled_mean)."""
    (w_enc, b_enc, mean, var, w1, b1, w2, b2) = params

    inv_std = jax.lax.rsqrt(var + EPS)       # (1, ENC_DIM)
    scaled_mean = mean * inv_std             # (1, ENC_DIM)

    w2_pad = jnp.zeros((HID_DIM, W_COLS), jnp.float32).at[:, :ACT_DIM].set(w2)
    w_blob = jnp.concatenate([w_enc, w1, w2_pad], axis=0)        # (128, 32)

    def _row(v):
        return jnp.zeros((1, W_COLS), jnp.float32).at[:, :v.shape[1]].set(v)

    vec_blob = jnp.concatenate(
        [_row(b_enc), _row(scaled_mean), _row(inv_std), _row(b1), _row(b2),
         jnp.zeros((3, W_COLS), jnp.float32)],                   # pad to 8 sublanes
        axis=0)                                                  # (8, 32)
    return w_blob, vec_blob


def normalized_encoding_wrapper(obs, w_blob, vec_blob, tile_b=TILE_B):
    # Mirror the torch module's dict/tensor handling.
    x = obs.get("obs") if isinstance(obs, dict) else obs
    x = jnp.asarray(x, jnp.float32)

    batch = x.shape[0]
    assert batch % tile_b == 0 and tile_b % 8 == 0, (batch, tile_b)
    grid = (batch // tile_b,)

    return pl.pallas_call(
        _wrapper_kernel,
        out_shape=jax.ShapeDtypeStruct((batch, ACT_DIM), jnp.float32),
        grid=grid,
        in_specs=[
            pl.BlockSpec((tile_b, OBS_DIM), lambda i: (i, 0)),     # x tile streams
            pl.BlockSpec((_W_ROWS, W_COLS), lambda i: (0, 0)),     # weights: VMEM-resident
            pl.BlockSpec((8, W_COLS), lambda i: (0, 0)),           # vectors: VMEM-resident
        ],
        out_specs=pl.BlockSpec((tile_b, ACT_DIM), lambda i: (i, 0)),
        compiler_params=pltpu.CompilerParams(
            dimension_semantics=("parallel",)),   # megacore-shard the batch axis
    )(x, w_blob, vec_blob)


def _reference(x, params):
    (w_enc, b_enc, mean, var, w1, b1, w2, b2) = params
    hp = jax.lax.Precision.HIGHEST
    enc = jnp.maximum(jnp.dot(x, w_enc, precision=hp) + b_enc, 0.0)
    norm = jnp.clip((enc - mean) / jnp.sqrt(var + EPS), -CLIP, CLIP)
    h1 = jnp.tanh(jnp.dot(norm, w1, precision=hp) + b1)
    return jnp.dot(h1, w2, precision=hp) + b2


def _make_params(key):
    ks = jax.random.split(key, 6)
    w_enc = jax.random.normal(ks[0], (OBS_DIM, ENC_DIM), jnp.float32) * 0.1
    b_enc = jnp.zeros((1, ENC_DIM), jnp.float32)
    mean = jax.random.normal(ks[1], (1, ENC_DIM), jnp.float32) * 0.05
    var = jax.nn.softplus(jax.random.normal(ks[2], (1, ENC_DIM), jnp.float32)) + 0.5
    w1 = jax.random.normal(ks[3], (ENC_DIM, HID_DIM), jnp.float32) * 0.1
    b1 = jnp.zeros((1, HID_DIM), jnp.float32)
    w2 = jax.random.normal(ks[4], (HID_DIM, ACT_DIM), jnp.float32) * 0.1
    b2 = jnp.zeros((1, ACT_DIM), jnp.float32)
    return (w_enc, b_enc, mean, var, w1, b1, w2, b2)


if __name__ == "__main__":
    key = jax.random.PRNGKey(0)
    k_x, k_p = jax.random.split(key)
    x = jax.random.normal(k_x, (B, OBS_DIM), jnp.float32)
    params = _make_params(k_p)

    # Packing (and the inv_std / scaled_mean fold) happens once per stats
    # update, not per forward call.
    w_blob, vec_blob = pack_params(params)

    out = normalized_encoding_wrapper(x, w_blob, vec_blob)
    out = jax.block_until_ready(out)

    ref = _reference(x, params)
    assert out.shape == (B, ACT_DIM)
    assert jnp.allclose(out, ref, atol=2e-4, rtol=2e-4)

    # TODO(synk): base_net **kwargs passthrough / max_action property are pure
    # Python plumbing with no kernel-level equivalent and are omitted; fusing
    # extra per-row heads (value / log-std) into the output to make the last
    # dim a multiple of 128 lanes is left to the full model integration.
    print("KERNEL_OK")
</pallas_src>

<mosaic_0001>
module attributes {stable_mosaic.version = 11 : i64} {
  func.func @_wrapper_kernel(%arg0: i32, %arg1: memref<128x64xf32, #tpu.memory_space<vmem>>, %arg2: memref<128x32xf32, #tpu.memory_space<vmem>>, %arg3: memref<8x32xf32, #tpu.memory_space<vmem>>, %arg4: memref<128x8xf32, #tpu.memory_space<vmem>>) attributes {dimension_semantics = [#tpu.dimension_semantics<parallel>], iteration_bounds = array<i64: 4>, scalar_prefetch = 0 : i64, scratch_operands = 0 : i64, tpu.core_type = #tpu.core_type<tc>, window_params = [{transform_indices = @transform_0, window_bounds = array<i64: 128, 64>}, {pipeline_mode = #tpu.pipeline_mode<synchronous>, transform_indices = @transform_1, window_bounds = array<i64: 128, 32>}, {pipeline_mode = #tpu.pipeline_mode<synchronous>, transform_indices = @transform_2, window_bounds = array<i64: 8, 32>}, {transform_indices = @transform_3, window_bounds = array<i64: 128, 8>}]} {
    %c0 = arith.constant 0 : index
    %c0_0 = arith.constant 0 : index
    %0 = vector.load %arg1[%c0, %c0_0] : memref<128x64xf32, #tpu.memory_space<vmem>>, vector<128x64xf32>
    %c0_1 = arith.constant 0 : index
    %c0_2 = arith.constant 0 : index
    %1 = vector.load %arg2[%c0_1, %c0_2] : memref<128x32xf32, #tpu.memory_space<vmem>>, vector<64x32xf32>
    %c64 = arith.constant 64 : index
    %c0_3 = arith.constant 0 : index
    %2 = vector.load %arg2[%c64, %c0_3] : memref<128x32xf32, #tpu.memory_space<vmem>>, vector<32x32xf32>
    %c96 = arith.constant 96 : index
    %c0_4 = arith.constant 0 : index
    %3 = vector.load %arg2[%c96, %c0_4] : memref<128x32xf32, #tpu.memory_space<vmem>>, vector<32x32xf32>
    %c0_5 = arith.constant 0 : index
    %c0_6 = arith.constant 0 : index
    %4 = vector.load %arg3[%c0_5, %c0_6] : memref<8x32xf32, #tpu.memory_space<vmem>>, vector<1x32xf32>
    %c1 = arith.constant 1 : index
    %c0_7 = arith.constant 0 : index
    %5 = vector.load %arg3[%c1, %c0_7] : memref<8x32xf32, #tpu.memory_space<vmem>>, vector<1x32xf32>
    %c2 = arith.constant 2 : index
    %c0_8 = arith.constant 0 : index
    %6 = vector.load %arg3[%c2, %c0_8] : memref<8x32xf32, #tpu.memory_space<vmem>>, vector<1x32xf32>
    %c3 = arith.constant 3 : index
    %c0_9 = arith.constant 0 : index
    %7 = vector.load %arg3[%c3, %c0_9] : memref<8x32xf32, #tpu.memory_space<vmem>>, vector<1x32xf32>
    %c4 = arith.constant 4 : index
    %c0_10 = arith.constant 0 : index
    %8 = vector.load %arg3[%c4, %c0_10] : memref<8x32xf32, #tpu.memory_space<vmem>>, vector<1x32xf32>
    %cst = arith.constant dense<0.000000e+00> : vector<128x32xf32>
    %9 = tpu.matmul %0, %1, %cst {dimension_numbers = #tpu.dot_dimension_numbers<[1], [0], [0], [1], [0, 0, 1, 1], [], []>} : vector<128x64xf32>, vector<64x32xf32>, vector<128x32xf32> -> vector<128x32xf32>
    %10 = vector.broadcast %4 : vector<1x32xf32> to vector<128x32xf32>
    %11 = arith.addf %9, %10 : vector<128x32xf32>
    %cst_11 = arith.constant 0.000000e+00 : f32
    %12 = vector.broadcast %cst_11 : f32 to vector<128x32xf32>
    %13 = arith.maximumf %11, %12 : vector<128x32xf32>
    %14 = vector.broadcast %6 : vector<1x32xf32> to vector<128x32xf32>
    %15 = arith.mulf %13, %14 : vector<128x32xf32>
    %16 = vector.broadcast %5 : vector<1x32xf32> to vector<128x32xf32>
    %17 = arith.subf %15, %16 : vector<128x32xf32>
    %cst_12 = arith.constant -1.000000e+01 : f32
    %cst_13 = arith.constant 1.000000e+01 : f32
    %18 = vector.broadcast %cst_12 : f32 to vector<128x32xf32>
    %19 = arith.maximumf %18, %17 : vector<128x32xf32>
    %20 = vector.broadcast %cst_13 : f32 to vector<128x32xf32>
    %21 = arith.minimumf %20, %19 : vector<128x32xf32>
    %cst_14 = arith.constant dense<0.000000e+00> : vector<128x32xf32>
    %22 = tpu.matmul %21, %2, %cst_14 {dimension_numbers = #tpu.dot_dimension_numbers<[1], [0], [0], [1], [0, 0, 1, 1], [], []>} : vector<128x32xf32>, vector<32x32xf32>, vector<128x32xf32> -> vector<128x32xf32>
    %23 = vector.broadcast %7 : vector<1x32xf32> to vector<128x32xf32>
    %24 = arith.addf %22, %23 : vector<128x32xf32>
    %25 = math.tanh %24 : vector<128x32xf32>
    %cst_15 = arith.constant dense<0.000000e+00> : vector<128x32xf32>
    %26 = tpu.matmul %25, %3, %cst_15 {dimension_numbers = #tpu.dot_dimension_numbers<[1], [0], [0], [1], [0, 0, 1, 1], [], []>} : vector<128x32xf32>, vector<32x32xf32>, vector<128x32xf32> -> vector<128x32xf32>
    %27 = vector.broadcast %8 : vector<1x32xf32> to vector<128x32xf32>
    %28 = arith.addf %26, %27 : vector<128x32xf32>
    %29 = vector.extract_strided_slice %28 {offsets = [0, 0], sizes = [128, 8], strides = [1, 1]} : vector<128x32xf32> to vector<128x8xf32>
    %c0_16 = arith.constant 0 : index
    %c0_17 = arith.constant 0 : index
    %30 = vector.load %arg4[%c0_16, %c0_17] : memref<128x8xf32, #tpu.memory_space<vmem>>, vector<128x8xf32>
    tpu.vector_store %arg4[%c0_16, %c0_17], %29 {strides = array<i32>} : memref<128x8xf32, #tpu.memory_space<vmem>>, vector<128x8xf32>,
    return
  }
  func.func @transform_0(%arg0: i32) -> (i32, i32) {
    %c0_i32 = arith.constant 0 : i32
    %c0_i32_0 = arith.constant 0 : i32
    return %arg0, %c0_i32 : i32, i32
  }
  func.func @transform_1(%arg0: i32) -> (i32, i32) {
    %c0_i32 = arith.constant 0 : i32
    %c0_i32_0 = arith.constant 0 : i32
    %c0_i32_1 = arith.constant 0 : i32
    return %c0_i32, %c0_i32_0 : i32, i32
  }
  func.func @transform_2(%arg0: i32) -> (i32, i32) {
    %c0_i32 = arith.constant 0 : i32
    %c0_i32_0 = arith.constant 0 : i32
    %c0_i32_1 = arith.constant 0 : i32
    return %c0_i32, %c0_i32_0 : i32, i32
  }
  func.func @transform_3(%arg0: i32) -> (i32, i32) {
    %c0_i32 = arith.constant 0 : i32
    %c0_i32_0 = arith.constant 0 : i32
    return %arg0, %c0_i32 : i32, i32
  }
}

</mosaic_0001>

<llo_original>
// kernel: tpu_custom_call.1
$region0: #{tpu_custom_call.1}
  #allocation0 [shape = 'u32[]', space=smem, size = 0x4, offset = 0x4, fixed_abs, tag = 'smem constant byte address 0x4 - core index']
  #allocation1 [shape = 'u32[144,128]{1,0:T(1,128)}', space=vmem, size = 0x12000, scoped, tag = 'internal scratch']
  %s0 = inlined_call_operand.vmem [shape: f32[512,64], index: 0, kind: input, shape index: {}]
  %s1 = inlined_call_operand.vmem [shape: f32[128,32], index: 1, kind: input, shape index: {}]
  %s2 = inlined_call_operand.vmem [shape: f32[8,32], index: 2, kind: input, shape index: {}]
  %s3 = inlined_call_operand.vmem [shape: f32[512,8], index: 3, kind: output, shape index: {}]
  %s4 = sld [smem:[#allocation0]]
  $region45: #{tpu_custom_call.1} parent=0
    _
  %s6 = ssub.s32 1, %s4
  %s7 = scalar_select 0, %s6, %s4
  loop: start=0, step=1, limit=6
  $region2: #{tpu_custom_call.1} parent=0 // loop_pre_header
    _
  $region3: #{tpu_custom_call.1} parent=0 // loop_header
    %s9 = sphi 0, %s13
    %p10 = scmp.ge.s32.totalorder %s9, 6
    %s19 = sphi 0, %s21
    %s22 = sphi 0, %s19
    %s23 = sphi 0, %s22
    %s39 = sphi 0, %s23
    %s43 = sphi 0, %s43
    %s45 = sphi 0, %s43
    %s46 = sphi 0, %s45
    %s60 = sphi 0, %s46
    %s64 = sphi 0, %s64
    %s66 = sphi 0, %s64
    %s67 = sphi 0, %s66
    %s81 = sphi 0, %s67
    %s87 = sphi 0, %s89
    %s90 = sphi 0, %s87
    %s91 = sphi 0, %s90
    %s107 = sphi 0, %s91
  $region4: #{tpu_custom_call.1} parent=0 // loop_header_branch
    %12 = sbr.rel (%p10) target = $region8
  $region5: #{tpu_custom_call.1} parent=0 // loop_body
    %s14 = ssub.s32 %s9, 1
    %s15 = ssub.s32 %s9, 2
    %s16 = sadd.s32 %s9, 1
    %s17 = ssub.s32 %s9, %s16
    %p18 = scmp.eq.s32.totalorder %s17, 0
    %s20 = sadd.s32 %s19, 1
    %s21 = scalar_select %p18, %s19, %s20
    %p24 = pneg %p18
    %p25 = scmp.eq.s32.totalorder %s9, 3
    %p26 = por %p24, %p25
    %p27 = scmp.ne.s32.totalorder %s19, %s22
    %p28 = scmp.eq.s32.totalorder %s9, 0
    %p29 = por %p27, %p28
    %p30 = scmp.ne.s32.totalorder %s19, %s22
    %p31 = scmp.eq.s32.totalorder %s14, 3
    %p32 = por %p30, %p31
    %p33 = scmp.ne.s32.totalorder %s22, %s23
    %p34 = scmp.eq.s32.totalorder %s14, 0
    %p35 = por %p33, %p34
    %p36 = scmp.ne.s32.totalorder %s22, %s23
    %p37 = scmp.eq.s32.totalorder %s15, 3
    %p38 = por %p36, %p37
    %p40 = scmp.ne.s32.totalorder %s23, %s39
    %p41 = scmp.eq.s32.totalorder %s15, 0
    %p42 = por %p40, %p41
    %s44 = sadd.s32 %s43, 1
    %p47 = scmp.eq.s32.totalorder %s9, 3
    %p48 = scmp.ne.s32.totalorder %s43, %s45
    %p49 = scmp.eq.s32.totalorder %s9, 0
    %p50 = por %p48, %p49
    %p51 = scmp.ne.s32.totalorder %s43, %s45
    %p52 = scmp.eq.s32.totalorder %s14, 3
    %p53 = por %p51, %p52
    %p54 = scmp.ne.s32.totalorder %s45, %s46
    %p55 = scmp.eq.s32.totalorder %s14, 0
    %p56 = por %p54, %p55
    %p57 = scmp.ne.s32.totalorder %s45, %s46
    %p58 = scmp.eq.s32.totalorder %s15, 3
    %p59 = por %p57, %p58
    %p61 = scmp.ne.s32.totalorder %s46, %s60
    %p62 = scmp.eq.s32.totalorder %s15, 0
    %p63 = por %p61, %p62
    %s65 = sadd.s32 %s64, 1
    %p68 = scmp.eq.s32.totalorder %s9, 3
    %p69 = scmp.ne.s32.totalorder %s64, %s66
    %p70 = scmp.eq.s32.totalorder %s9, 0
    %p71 = por %p69, %p70
    %p72 = scmp.ne.s32.totalorder %s64, %s66
    %p73 = scmp.eq.s32.totalorder %s14, 3
    %p74 = por %p72, %p73
    %p75 = scmp.ne.s32.totalorder %s66, %s67
    %p76 = scmp.eq.s32.totalorder %s14, 0
    %p77 = por %p75, %p76
    %p78 = scmp.ne.s32.totalorder %s66, %s67
    %p79 = scmp.eq.s32.totalorder %s15, 3
    %p80 = por %p78, %p79
    %p82 = scmp.ne.s32.totalorder %s67, %s81
    %p83 = scmp.eq.s32.totalorder %s15, 0
    %p84 = por %p82, %p83
    %s85 = ssub.s32 %s9, %s16
    %p86 = scmp.eq.s32.totalorder %s85, 0
    %s88 = sadd.s32 %s87, 1
    %s89 = scalar_select %p86, %s87, %s88
    %p92 = pneg %p86
    %p93 = scmp.eq.s32.totalorder %s9, 3
    %p94 = por %p92, %p93
    %p95 = scmp.ne.s32.totalorder %s87, %s90
    %p96 = scmp.eq.s32.totalorder %s9, 0
    %p97 = por %p95, %p96
    %p98 = scmp.ne.s32.totalorder %s87, %s90
    %p99 = scmp.eq.s32.totalorder %s14, 3
    %p100 = por %p98, %p99
    %p101 = scmp.ne.s32.totalorder %s90, %s91
    %p102 = scmp.eq.s32.totalorder %s14, 0
    %p103 = por %p101, %p102
    %p104 = scmp.ne.s32.totalorder %s90, %s91
    %p105 = scmp.eq.s32.totalorder %s15, 3
    %p106 = por %p104, %p105
    %p108 = scmp.ne.s32.totalorder %s91, %s107
    %p109 = scmp.eq.s32.totalorder %s15, 0
    %p110 = por %p108, %p109
    %p111 = scmp.le.s32.totalorder 1, %s9
    %p112 = scmp.lt.s32.totalorder %s9, 5
    %p113 = pnand %p111, %p112
    %p114 = pneg %p113
    // Predicated region
    $region9: #{tpu_custom_call.1} parent=5 // pred_check
      _
    $region10: #{tpu_custom_call.1} parent=5 // pred_check_branch
      %116 = sbr.rel (%p113) target = $region12
    $region11: #{tpu_custom_call.1} parent=5 // pred_region
      %s117 = ssub.s32 %s9, 1
      // Predicated region
      $region13: #{tpu_custom_call.1} parent=11 // pred_check
        %p118 = pneg %p56
      $region14: #{tpu_custom_call.1} parent=11 // pred_check_branch
        %120 = sbr.rel (%p118) target = $region16
      $region15: #{tpu_custom_call.1} parent=11 // pred_region
        _
      $region16: #{tpu_custom_call.1} parent=11 // pred_fallthru
        _
      // Predicated region
      $region17: #{tpu_custom_call.1} parent=11 // pred_check
        %p121 = pneg %p77
      $region18: #{tpu_custom_call.1} parent=11 // pred_check_branch
        %123 = sbr.rel (%p121) target = $region20
      $region19: #{tpu_custom_call.1} parent=11 // pred_region
        _
      $region20: #{tpu_custom_call.1} parent=11 // pred_fallthru
        _
    $region12: #{tpu_custom_call.1} parent=5 // pred_fallthru
      _
    %p124 = scmp.lt.s32.totalorder %s9, 4
    // Predicated region
    $region21: #{tpu_custom_call.1} parent=5 // pred_check
      %p125 = pneg %p124
    $region22: #{tpu_custom_call.1} parent=5 // pred_check_branch
      %127 = sbr.rel (%p125) target = $region24
    $region23: #{tpu_custom_call.1} parent=5 // pred_region
      // Predicated region
      $region25: #{tpu_custom_call.1} parent=23 // pred_check
        %p128 = pneg %p29
      $region26: #{tpu_custom_call.1} parent=23 // pred_check_branch
        %130 = sbr.rel (%p128) target = $region28
      $region27: #{tpu_custom_call.1} parent=23 // pred_region
        %s131 = smul.u32 16, %s9
        %p132 = scmp.lt.s32.totalorder %s131, 63
        %s133 = scalar_select %p132, %s131, 63
        %s134 = smul.addr %s133, 8
        %s135 = scalar_lea.vmem %s0, %s134
        %s136 = smul.u32 16, %s9
      $region28: #{tpu_custom_call.1} parent=23 // pred_fallthru
        _
    $region24: #{tpu_custom_call.1} parent=5 // pred_fallthru
      _
    %p137 = scmp.le.s32.totalorder 1, %s9
    %p138 = scmp.lt.s32.totalorder %s9, 5
    %p139 = pnand %p137, %p138
    %p140 = pneg %p139
    // Predicated region
    $region29: #{tpu_custom_call.1} parent=5 // pred_check
      _
    $region30: #{tpu_custom_call.1} parent=5 // pred_check_branch
      %142 = sbr.rel (%p139) target = $region32
    $region31: #{tpu_custom_call.1} parent=5 // pred_region
      %s143 = ssub.s32 %s9, 1
      %s144 = smul.u32 16, %s14
      %p145 = scmp.lt.s32.totalorder %s144, 63
      %s146 = scalar_select %p145, %s144, 63
      %s147 = smul.addr %s146, 8
      %s148 = scalar_lea.vmem %s0, %s147
      %p149 = pneg %p35
      %p150 = pneg %p32
      %p151 = pneg %p56
      %p152 = pneg %p53
      %p153 = pneg %p77
      %p154 = pneg %p74
      %p155 = pneg %p103
      %p156 = pneg %p100
      %s157 = smul.u32 16, %s14
      %p158 = scmp.lt.s32.totalorder %s157, 63
      %s159 = scalar_select %p158, %s157, 63
      %s160 = smul.addr %s159, 8
      %s161 = scalar_lea.vmem %s3, %s160
      %s162 = smul.u32 16, %s14
      %p163 = scmp.lt.s32.totalorder %s162, 63
      %s164 = scalar_select %p163, %s162, 63
      %s165 = smul.addr %s164, 8
      %s166 = scalar_lea.vmem %s0, %s165
      %s167 = smul.u32 16, %s14
      %s168 = smul.u32 16, %s14
      %p169 = scmp.lt.s32.totalorder %s168, 63
      %s170 = scalar_select %p169, %s168, 63
      %s171 = smul.addr %s170, 8
      %s172 = scalar_lea.vmem %s3, %s171
      %s173 = smul.u32 16, %s14
      %v174 = vld [vmem:[%s166] sm:$0xff]
      %v175 = vld [vmem:[%s166 + $0x8] sm:$0xff]
      %v176 = vld [vmem:[%s166 + $0x10] sm:$0xff]
      %v177 = vld [vmem:[%s166 + $0x18] sm:$0xff]
      %v178 = vld [vmem:[%s166 + $0x20] sm:$0xff]
      %v179 = vld [vmem:[%s166 + $0x28] sm:$0xff]
      %v180 = vld [vmem:[%s166 + $0x30] sm:$0xff]
      %v181 = vld [vmem:[%s166 + $0x38] sm:$0xff]
      %v182 = vld [vmem:[%s166 + $0x40] sm:$0xff]
      %v183 = vld [vmem:[%s166 + $0x48] sm:$0xff]
      %v184 = vld [vmem:[%s166 + $0x50] sm:$0xff]
      %v185 = vld [vmem:[%s166 + $0x58] sm:$0xff]
      %v186 = vld [vmem:[%s166 + $0x60] sm:$0xff]
      %v187 = vld [vmem:[%s166 + $0x68] sm:$0xff]
      %v188 = vld [vmem:[%s166 + $0x70] sm:$0xff]
      %v189 = vld [vmem:[%s166 + $0x78] sm:$0xff]
      %v190 = vld [vmem:[%s1] sm:$0xff]
      %v191 = vld [vmem:[%s1 + $0x8] sm:$0xff]
      %v192 = vld [vmem:[%s1 + $0x10] sm:$0xff]
      %v193 = vld [vmem:[%s1 + $0x18] sm:$0xff]
      %v194 = vld [vmem:[%s1 + $0x20] sm:$0xff]
      %v195 = vld [vmem:[%s1 + $0x28] sm:$0xff]
      %v196 = vld [vmem:[%s1 + $0x30] sm:$0xff]
      %v197 = vld [vmem:[%s1 + $0x38] sm:$0xff]
      %v198 = vld [vmem:[%s1 + $0x40] sm:$0xff]
      %v199 = vld [vmem:[%s1 + $0x48] sm:$0xff]
      %v200 = vld [vmem:[%s1 + $0x50] sm:$0xff]
      %v201 = vld [vmem:[%s1 + $0x58] sm:$0xff]
      %v202 = vld [vmem:[%s1 + $0x60] sm:$0xff]
      %v203 = vld [vmem:[%s1 + $0x68] sm:$0xff]
      %v204 = vld [vmem:[%s1 + $0x70] sm:$0xff]
      %v205 = vld [vmem:[%s1 + $0x78] sm:$0xff]
      %v206 = vld [vmem:[%s2] sm:$0x1]
      %v207 = vld [vmem:[%s2 + $0x1] sm:$0x1]
      %v208 = vld [vmem:[%s2 + $0x2] sm:$0x1]
      %v209 = vld [vmem:[%s2 + $0x3] sm:$0x1]
      %v210 = vld [vmem:[%s2 + $0x4] sm:$0x1]
      %v211 = vlaneseq
      %v212 = vshrl.u32 %v211, 7
      %v213 = vsub.s32 0, %v212
      %v214 = vrot.slane %v206, %v213
      %vm215 = vcmask 523264
      %v217 = vsel %vm215, %v174, 0
      %v220 = vsel %vm215, %v175, 0
      %v223 = vsel %vm215, %v176, 0
      %v226 = vsel %vm215, %v177, 0
      %v229 = vsel %vm215, %v178, 0
      %v232 = vsel %vm215, %v179, 0
      %v235 = vsel %vm215, %v180, 0
      %v238 = vsel %vm215, %v181, 0
      %v241 = vsel %vm215, %v182, 0
      %v244 = vsel %vm215, %v183, 0
      %v247 = vsel %vm215, %v184, 0
      %v250 = vsel %vm215, %v185, 0
      %v253 = vsel %vm215, %v186, 0
      %v256 = vsel %vm215, %v187, 0
      %v259 = vsel %vm215, %v188, 0
      %v262 = vsel %vm215, %v189, 0
      %264 = vmatprep.subr.mxu0 0.0
      %265 = vmatpush1.msra.mxu0 %v190
      %266 = vmatprep.subr.mxu0 0.0
      %267 = vmatpush1.msra.mxu0 %v191
      %268 = vmatprep.subr.mxu0 0.0
      %269 = vmatpush1.msra.mxu0 %v192
      %270 = vmatprep.subr.mxu0 0.0
      %271 = vmatpush1.msra.mxu0 %v193
      %272 = vmatprep.subr.mxu0 0.0
      %273 = vmatpush1.msra.mxu0 %v194
      %274 = vmatprep.subr.mxu0 0.0
      %275 = vmatpush1.msra.mxu0 %v195
      %276 = vmatprep.subr.mxu0 0.0
      %277 = vmatpush1.msra.mxu0 %v196
      %278 = vmatprep.subr.mxu0 0.0
      %279 = vmatpush1.msra.mxu0 %v197
      %280 = vmatprep.subr.mxu0 0.0
      %281 = vmatpush1.msra.mxu0 0.0
      %282 = vmatprep.subr.mxu0 0.0
      %283 = vmatpush1.msra.mxu0 0.0
      %284 = vmatprep.subr.mxu0 0.0
      %285 = vmatpush1.msra.mxu0 0.0
      %286 = vmatprep.subr.mxu0 0.0
      %287 = vmatpush1.msra.mxu0 0.0
      %288 = vmatprep.subr.mxu0 0.0
      %289 = vmatpush1.msra.mxu0 0.0
      %290 = vmatprep.subr.mxu0 0.0
      %291 = vmatpush1.msra.mxu0 0.0
      %292 = vmatprep.subr.mxu0 0.0
      %293 = vmatpush1.msra.mxu0 0.0
      %294 = vmatprep.subr.mxu0 0.0
      %295 = vmatpush1.msra.mxu0 0.0
      %296 = vmatprep.subr.mxu0 0.0
      %297 = vmatpush1.msra.mxu0 0.0
      %298 = vmatprep.subr.mxu0 0.0
      %299 = vmatpush1.msra.mxu0 0.0
      %300 = vmatprep.subr.mxu0 0.0
      %301 = vmatpush1.msra.mxu0 0.0
      %302 = vmatprep.subr.mxu0 0.0
      %303 = vmatpush1.msra.mxu0 0.0
      %304 = vmatprep.subr.mxu0 0.0
      %305 = vmatpush1.msra.mxu0 0.0
      %306 = vmatprep.subr.mxu0 0.0
      %307 = vmatpush1.msra.mxu0 0.0
      %308 = vmatprep.subr.mxu0 0.0
      %309 = vmatpush1.msra.mxu0 0.0
      %310 = vmatprep.subr.mxu0 0.0
      %311 = vmatpush1.msra.mxu0 0.0
      %312 = vmatprep.subr.mxu0 0.0
      %313 = vmatpush1.msra.mxu0 0.0
      %314 = vmatprep.subr.mxu0 0.0
      %315 = vmatpush1.msra.mxu0 0.0
      %316 = vmatprep.subr.mxu0 0.0
      %317 = vmatpush1.msra.mxu0 0.0
      %318 = vmatprep.subr.mxu0 0.0
      %319 = vmatpush1.msra.mxu0 0.0
      %320 = vmatprep.subr.mxu0 0.0
      %321 = vmatpush1.msra.mxu0 0.0
      %322 = vmatprep.subr.mxu0 0.0
      %323 = vmatpush1.msra.mxu0 0.0
      %324 = vmatprep.subr.mxu0 0.0
      %325 = vmatpush1.msra.mxu0 0.0
      %326 = vmatprep.subr.mxu0 0.0
      %327 = vmatpush1.msra.mxu0 0.0
      %328 = vmatprep.mubr.f32.mxu0 0.0
      %329 = vmatmul.mubr.f32.gmra.mrb[0].mxu0 %v217
      %v330 = vpop.f32.mrb[0].mxu0
      %v331 = vadd.f32 %v214, %v330
      %v332 = vpop.f32.mrb[0].mxu0
      %333 = vmatprep.mubr.f32.mxu0 0.0
      %334 = vmatmul.mubr.f32.gmra.mrb[0].mxu0 %v220
      %v335 = vpop.f32.mrb[0].mxu0
      %v336 = vadd.f32 %v214, %v335
      %v337 = vpop.f32.mrb[0].mxu0
      %338 = vmatprep.mubr.f32.mxu0 0.0
      %339 = vmatmul.mubr.f32.gmra.mrb[0].mxu0 %v223
      %v340 = vpop.f32.mrb[0].mxu0
      %v341 = vadd.f32 %v214, %v340
      %v342 = vpop.f32.mrb[0].mxu0
      %343 = vmatprep.mubr.f32.mxu0 0.0
      %344 = vmatmul.mubr.f32.gmra.mrb[0].mxu0 %v226
      %v345 = vpop.f32.mrb[0].mxu0
      %v346 = vadd.f32 %v214, %v345
      %v347 = vpop.f32.mrb[0].mxu0
      %348 = vmatprep.mubr.f32.mxu0 0.0
      %349 = vmatmul.mubr.f32.gmra.mrb[0].mxu0 %v229
      %v350 = vpop.f32.mrb[0].mxu0
      %v351 = vadd.f32 %v214, %v350
      %v352 = vpop.f32.mrb[0].mxu0
      %353 = vmatprep.mubr.f32.mxu0 0.0
      %354 = vmatmul.mubr.f32.gmra.mrb[0].mxu0 %v232
      %v355 = vpop.f32.mrb[0].mxu0
      %v356 = vadd.f32 %v214, %v355
      %v357 = vpop.f32.mrb[0].mxu0
      %358 = vmatprep.mubr.f32.mxu0 0.0
      %359 = vmatmul.mubr.f32.gmra.mrb[0].mxu0 %v235
      %v360 = vpop.f32.mrb[0].mxu0
      %v361 = vadd.f32 %v214, %v360
      %v362 = vpop.f32.mrb[0].mxu0
      %363 = vmatprep.mubr.f32.mxu0 0.0
      %364 = vmatmul.mubr.f32.gmra.mrb[0].mxu0 %v238
      %v365 = vpop.f32.mrb[0].mxu0
      %v366 = vadd.f32 %v214, %v365
      %v367 = vpop.f32.mrb[0].mxu0
      %368 = vmatprep.mubr.f32.mxu0 0.0
      %369 = vmatmul.mubr.f32.gmra.mrb[0].mxu0 %v241
      %v370 = vpop.f32.mrb[0].mxu0
      %v371 = vadd.f32 %v214, %v370
      %v372 = vpop.f32.mrb[0].mxu0
      %373 = vmatprep.mubr.f32.mxu0 0.0
      %374 = vmatmul.mubr.f32.gmra.mrb[0].mxu0 %v244
      %v375 = vpop.f32.mrb[0].mxu0
      %v376 = vadd.f32 %v214, %v375
      %v377 = vpop.f32.mrb[0].mxu0
      %378 = vmatprep.mubr.f32.mxu0 0.0
      %379 = vmatmul.mubr.f32.gmra.mrb[0].mxu0 %v247
      %v380 = vpop.f32.mrb[0].mxu0
      %v381 = vadd.f32 %v214, %v380
      %v382 = vpop.f32.mrb[0].mxu0
      %383 = vmatprep.mubr.f32.mxu0 0.0
      %384 = vmatmul.mubr.f32.gmra.mrb[0].mxu0 %v250
      %v385 = vpop.f32.mrb[0].mxu0
      %v386 = vadd.f32 %v214, %v385
      %v387 = vpop.f32.mrb[0].mxu0
      %388 = vmatprep.mubr.f32.mxu0 0.0
      %389 = vmatmul.mubr.f32.gmra.mrb[0].mxu0 %v253
      %v390 = vpop.f32.mrb[0].mxu0
      %v391 = vadd.f32 %v214, %v390
      %v392 = vpop.f32.mrb[0].mxu0
      %393 = vmatprep.mubr.f32.mxu0 0.0
      %394 = vmatmul.mubr.f32.gmra.mrb[0].mxu0 %v256
      %v395 = vpop.f32.mrb[0].mxu0
      %v396 = vadd.f32 %v214, %v395
      %v397 = vpop.f32.mrb[0].mxu0
      %398 = vmatprep.mubr.f32.mxu0 0.0
      %399 = vmatmul.mubr.f32.gmra.mrb[0].mxu0 %v259
      %v400 = vpop.f32.mrb[0].mxu0
      %v401 = vadd.f32 %v214, %v400
      %v402 = vpop.f32.mrb[0].mxu0
      %403 = vmatprep.mubr.f32.mxu0 0.0
      %404 = vmatmul.mubr.f32.gmra.mrb[0].mxu0 %v262
      %v405 = vpop.f32.mrb[0].mxu0
      %v406 = vadd.f32 %v214, %v405
      %v407 = vpop.f32.mrb[0].mxu0
      %408 = vdwg.mxu0
      %v409 = vmax.f32 %v331, 0.0
      %v410 = vmax.f32 %v336, 0.0
      %v411 = vmax.f32 %v341, 0.0
      %v412 = vmax.f32 %v346, 0.0
      %v413 = vmax.f32 %v351, 0.0
      %v414 = vmax.f32 %v356, 0.0
      %v415 = vmax.f32 %v361, 0.0
      %v416 = vmax.f32 %v366, 0.0
      %v417 = vmax.f32 %v371, 0.0
      %v418 = vmax.f32 %v376, 0.0
      %v419 = vmax.f32 %v381, 0.0
      %v420 = vmax.f32 %v386, 0.0
      %v421 = vmax.f32 %v391, 0.0
      %v422 = vmax.f32 %v396, 0.0
      %v423 = vmax.f32 %v401, 0.0
      %v424 = vmax.f32 %v406, 0.0
      %v425 = vlaneseq
      %v426 = vshrl.u32 %v425, 7
      %v427 = vsub.s32 0, %v426
      %v428 = vrot.slane %v208, %v427
      %v429 = vmul.f32 %v409, %v428
      %v430 = vmul.f32 %v410, %v428
      %v431 = vmul.f32 %v411, %v428
      %v432 = vmul.f32 %v412, %v428
      %v433 = vmul.f32 %v413, %v428
      %v434 = vmul.f32 %v414, %v428
      %v435 = vmul.f32 %v415, %v428
      %v436 = vmul.f32 %v416, %v428
      %v437 = vmul.f32 %v417, %v428
      %v438 = vmul.f32 %v418, %v428
      %v439 = vmul.f32 %v419, %v428
      %v440 = vmul.f32 %v420, %v428
      %v441 = vmul.f32 %v421, %v428
      %v442 = vmul.f32 %v422, %v428
      %v443 = vmul.f32 %v423, %v428
      %v444 = vmul.f32 %v424, %v428
      %v445 = vlaneseq
      %v446 = vshrl.u32 %v445, 7
      %v447 = vsub.s32 0, %v446
      %v448 = vrot.slane %v207, %v447
      %v449 = vsub.f32 %v429, %v448
      %v450 = vsub.f32 %v430, %v448
      %v451 = vsub.f32 %v431, %v448
      %v452 = vsub.f32 %v432, %v448
      %v453 = vsub.f32 %v433, %v448
      %v454 = vsub.f32 %v434, %v448
      %v455 = vsub.f32 %v435, %v448
      %v456 = vsub.f32 %v436, %v448
      %v457 = vsub.f32 %v437, %v448
      %v458 = vsub.f32 %v438, %v448
      %v459 = vsub.f32 %v439, %v448
      %v460 = vsub.f32 %v440, %v448
      %v461 = vsub.f32 %v441, %v448
      %v462 = vsub.f32 %v442, %v448
      %v463 = vsub.f32 %v443, %v448
      %v464 = vsub.f32 %v444, %v448
      %v465 = vmax.f32 %v449, -10.0
      %v466 = vmax.f32 %v450, -10.0
      %v467 = vmax.f32 %v451, -10.0
      %v468 = vmax.f32 %v452, -10.0
      %v469 = vmax.f32 %v453, -10.0
      %v470 = vmax.f32 %v454, -10.0
      %v471 = vmax.f32 %v455, -10.0
      %v472 = vmax.f32 %v456, -10.0
      %v473 = vmax.f32 %v457, -10.0
      %v474 = vmax.f32 %v458, -10.0
      %v475 = vmax.f32 %v459, -10.0
      %v476 = vmax.f32 %v460, -10.0
      %v477 = vmax.f32 %v461, -10.0
      %v478 = vmax.f32 %v462, -10.0
      %v479 = vmax.f32 %v463, -10.0
      %v480 = vmax.f32 %v464, -10.0
      %v481 = vmin.f32 %v465, 10.0
      %v482 = vmin.f32 %v466, 10.0
      %v483 = vmin.f32 %v467, 10.0
      %v484 = vmin.f32 %v468, 10.0
      %v485 = vmin.f32 %v469, 10.0
      %v486 = vmin.f32 %v470, 10.0
      %v487 = vmin.f32 %v471, 10.0
      %v488 = vmin.f32 %v472, 10.0
      %v489 = vmin.f32 %v473, 10.0
      %v490 = vmin.f32 %v474, 10.0
      %v491 = vmin.f32 %v475, 10.0
      %v492 = vmin.f32 %v476, 10.0
      %v493 = vmin.f32 %v477, 10.0
      %v494 = vmin.f32 %v478, 10.0
      %v495 = vmin.f32 %v479, 10.0
      %v496 = vmin.f32 %v480, 10.0
      %v497 = vlaneseq
      %v498 = vshrl.u32 %v497, 7
      %v499 = vsub.s32 0, %v498
      %v500 = vrot.slane %v209, %v499
      %vm501 = vcmask 261120
      %v503 = vsel %vm501, %v481, 0
      %v506 = vsel %vm501, %v482, 0
      %v509 = vsel %vm501, %v483, 0
      %v512 = vsel %vm501, %v484, 0
      %v515 = vsel %vm501, %v485, 0
      %v518 = vsel %vm501, %v486, 0
      %v521 = vsel %vm501, %v487, 0
      %v524 = vsel %vm501, %v488, 0
      %v527 = vsel %vm501, %v489, 0
      %v530 = vsel %vm501, %v490, 0
      %v533 = vsel %vm501, %v491, 0
      %v536 = vsel %vm501, %v492, 0
      %v539 = vsel %vm501, %v493, 0
      %v542 = vsel %vm501, %v494, 0
      %v545 = vsel %vm501, %v495, 0
      %v548 = vsel %vm501, %v496, 0
      %550 = vmatprep.subr.mxu0 0.0
      %551 = vmatpush1.msra.mxu0 %v198
      %552 = vmatprep.subr.mxu0 0.0
      %553 = vmatpush1.msra.mxu0 %v199
      %554 = vmatprep.subr.mxu0 0.0
      %555 = vmatpush1.msra.mxu0 %v200
      %556 = vmatprep.subr.mxu0 0.0
      %557 = vmatpush1.msra.mxu0 %v201
      %558 = vmatprep.subr.mxu0 0.0
      %559 = vmatpush1.msra.mxu0 0.0
      %560 = vmatprep.subr.mxu0 0.0
      %561 = vmatpush1.msra.mxu0 0.0
      %562 = vmatprep.subr.mxu0 0.0
      %563 = vmatpush1.msra.mxu0 0.0
      %564 = vmatprep.subr.mxu0 0.0
      %565 = vmatpush1.msra.mxu0 0.0
      %566 = vmatprep.subr.mxu0 0.0
      %567 = vmatpush1.msra.mxu0 0.0
      %568 = vmatprep.subr.mxu0 0.0
      %569 = vmatpush1.msra.mxu0 0.0
      %570 = vmatprep.subr.mxu0 0.0
      %571 = vmatpush1.msra.mxu0 0.0
      %572 = vmatprep.subr.mxu0 0.0
      %573 = vmatpush1.msra.mxu0 0.0
      %574 = vmatprep.subr.mxu0 0.0
      %575 = vmatpush1.msra.mxu0 0.0
      %576 = vmatprep.subr.mxu0 0.0
      %577 = vmatpush1.msra.mxu0 0.0
      %578 = vmatprep.subr.mxu0 0.0
      %579 = vmatpush1.msra.mxu0 0.0
      %580 = vmatprep.subr.mxu0 0.0
      %581 = vmatpush1.msra.mxu0 0.0
      %582 = vmatprep.subr.mxu0 0.0
      %583 = vmatpush1.msra.mxu0 0.0
      %584 = vmatprep.subr.mxu0 0.0
      %585 = vmatpush1.msra.mxu0 0.0
      %586 = vmatprep.subr.mxu0 0.0
      %587 = vmatpush1.msra.mxu0 0.0
      %588 = vmatprep.subr.mxu0 0.0
      %589 = vmatpush1.msra.mxu0 0.0
      %590 = vmatprep.subr.mxu0 0.0
      %591 = vmatpush1.msra.mxu0 0.0
      %592 = vmatprep.subr.mxu0 0.0
      %593 = vmatpush1.msra.mxu0 0.0
      %594 = vmatprep.subr.mxu0 0.0
      %595 = vmatpush1.msra.mxu0 0.0
      %596 = vmatprep.subr.mxu0 0.0
      %597 = vmatpush1.msra.mxu0 0.0
      %598 = vmatprep.subr.mxu0 0.0
      %599 = vmatpush1.msra.mxu0 0.0
      %600 = vmatprep.subr.mxu0 0.0
      %601 = vmatpush1.msra.mxu0 0.0
      %602 = vmatprep.subr.mxu0 0.0
      %603 = vmatpush1.msra.mxu0 0.0
      %604 = vmatprep.subr.mxu0 0.0
      %605 = vmatpush1.msra.mxu0 0.0
      %606 = vmatprep.subr.mxu0 0.0
      %607 = vmatpush1.msra.mxu0 0.0
      %608 = vmatprep.subr.mxu0 0.0
      %609 = vmatpush1.msra.mxu0 0.0
      %610 = vmatprep.subr.mxu0 0.0
      %611 = vmatpush1.msra.mxu0 0.0
      %612 = vmatprep.subr.mxu0 0.0
      %613 = vmatpush1.msra.mxu0 0.0
      %614 = vmatprep.mubr.f32.mxu0 0.0
      %615 = vmatmul.mubr.f32.gmra.mrb[0].mxu0 %v503
      %v616 = vpop.f32.mrb[0].mxu0
      %v617 = vadd.f32 %v500, %v616
      %v618 = vpop.f32.mrb[0].mxu0
      %619 = vmatprep.mubr.f32.mxu0 0.0
      %620 = vmatmul.mubr.f32.gmra.mrb[0].mxu0 %v506
      %v621 = vpop.f32.mrb[0].mxu0
      %v622 = vadd.f32 %v500, %v621
      %v623 = vpop.f32.mrb[0].mxu0
      %624 = vmatprep.mubr.f32.mxu0 0.0
      %625 = vmatmul.mubr.f32.gmra.mrb[0].mxu0 %v509
      %v626 = vpop.f32.mrb[0].mxu0
      %v627 = vadd.f32 %v500, %v626
      %v628 = vpop.f32.mrb[0].mxu0
      %629 = vmatprep.mubr.f32.mxu0 0.0
      %630 = vmatmul.mubr.f32.gmra.mrb[0].mxu0 %v512
      %v631 = vpop.f32.mrb[0].mxu0
      %v632 = vadd.f32 %v500, %v631
      %v633 = vpop.f32.mrb[0].mxu0
      %634 = vmatprep.mubr.f32.mxu0 0.0
      %635 = vmatmul.mubr.f32.gmra.mrb[0].mxu0 %v515
      %v636 = vpop.f32.mrb[0].mxu0
      %v637 = vadd.f32 %v500, %v636
      %v638 = vpop.f32.mrb[0].mxu0
      %639 = vmatprep.mubr.f32.mxu0 0.0
      %640 = vmatmul.mubr.f32.gmra.mrb[0].mxu0 %v518
      %v641 = vpop.f32.mrb[0].mxu0
      %v642 = vadd.f32 %v500, %v641
      %v643 = vpop.f32.mrb[0].mxu0
      %644 = vmatprep.mubr.f32.mxu0 0.0
      %645 = vmatmul.mubr.f32.gmra.mrb[0].mxu0 %v521
      %v646 = vpop.f32.mrb[0].mxu0
      %v647 = vadd.f32 %v500, %v646
      %v648 = vpop.f32.mrb[0].mxu0
      %649 = vmatprep.mubr.f32.mxu0 0.0
      %650 = vmatmul.mubr.f32.gmra.mrb[0].mxu0 %v524
      %v651 = vpop.f32.mrb[0].mxu0
      %v652 = vadd.f32 %v500, %v651
      %v653 = vpop.f32.mrb[0].mxu0
      %654 = vmatprep.mubr.f32.mxu0 0.0
      %655 = vmatmul.mubr.f32.gmra.mrb[0].mxu0 %v527
      %v656 = vpop.f32.mrb[0].mxu0
      %v657 = vadd.f32 %v500, %v656
      %v658 = vpop.f32.mrb[0].mxu0
      %659 = vmatprep.mubr.f32.mxu0 0.0
      %660 = vmatmul.mubr.f32.gmra.mrb[0].mxu0 %v530
      %v661 = vpop.f32.mrb[0].mxu0
      %v662 = vadd.f32 %v500, %v661
      %v663 = vpop.f32.mrb[0].mxu0
      %664 = vmatprep.mubr.f32.mxu0 0.0
      %665 = vmatmul.mubr.f32.gmra.mrb[0].mxu0 %v533
      %v666 = vpop.f32.mrb[0].mxu0
      %v667 = vadd.f32 %v500, %v666
      %v668 = vpop.f32.mrb[0].mxu0
      %669 = vmatprep.mubr.f32.mxu0 0.0
      %670 = vmatmul.mubr.f32.gmra.mrb[0].mxu0 %v536
      %v671 = vpop.f32.mrb[0].mxu0
      %v672 = vadd.f32 %v500, %v671
      %v673 = vpop.f32.mrb[0].mxu0
      %674 = vmatprep.mubr.f32.mxu0 0.0
      %675 = vmatmul.mubr.f32.gmra.mrb[0].mxu0 %v539
      %v676 = vpop.f32.mrb[0].mxu0
      %v677 = vadd.f32 %v500, %v676
      %v678 = vpop.f32.mrb[0].mxu0
      %679 = vmatprep.mubr.f32.mxu0 0.0
      %680 = vmatmul.mubr.f32.gmra.mrb[0].mxu0 %v542
      %v681 = vpop.f32.mrb[0].mxu0
      %v682 = vadd.f32 %v500, %v681
      %v683 = vpop.f32.mrb[0].mxu0
      %684 = vmatprep.mubr.f32.mxu0 0.0
      %685 = vmatmul.mubr.f32.gmra.mrb[0].mxu0 %v545
      %v686 = vpop.f32.mrb[0].mxu0
      %v687 = vadd.f32 %v500, %v686
      %v688 = vpop.f32.mrb[0].mxu0
      %689 = vmatprep.mubr.f32.mxu0 0.0
      %690 = vmatmul.mubr.f32.gmra.mrb[0].mxu0 %v548
      %v691 = vpop.f32.mrb[0].mxu0
      %v692 = vadd.f32 %v500, %v691
      %v693 = vpop.f32.mrb[0].mxu0
      %694 = vdwg.mxu0
      %v695 = vtanh.pop %v617
      %v696 = vtanh.pop %v622
      %v697 = vtanh.pop %v627
      %v698 = vtanh.pop %v632
      %v699 = vtanh.pop %v637
      %v700 = vtanh.pop %v642
      %v701 = vtanh.pop %v647
      %v702 = vtanh.pop %v652
      %v703 = vtanh.pop %v657
      %v704 = vtanh.pop %v662
      %v705 = vtanh.pop %v667
      %v706 = vtanh.pop %v672
      %v707 = vtanh.pop %v677
      %v708 = vtanh.pop %v682
      %v709 = vtanh.pop %v687
      %v710 = vtanh.pop %v692
      %v711 = vlaneseq
      %v712 = vshrl.u32 %v711, 7
      %v713 = vsub.s32 0, %v712
      %v714 = vrot.slane %v210, %v713
      %v716 = vsel %vm501, %v695, 0
      %v719 = vsel %vm501, %v696, 0
      %v722 = vsel %vm501, %v697, 0
      %v725 = vsel %vm501, %v698, 0
      %v728 = vsel %vm501, %v699, 0
      %v731 = vsel %vm501, %v700, 0
      %v734 = vsel %vm501, %v701, 0
      %v737 = vsel %vm501, %v702, 0
      %v740 = vsel %vm501, %v703, 0
      %v743 = vsel %vm501, %v704, 0
      %v746 = vsel %vm501, %v705, 0
      %v749 = vsel %vm501, %v706, 0
      %v752 = vsel %vm501, %v707, 0
      %v755 = vsel %vm501, %v708, 0
      %v758 = vsel %vm501, %v709, 0
      %v761 = vsel %vm501, %v710, 0
      %763 = vmatprep.subr.mxu0 0.0
      %764 = vmatpush1.msra.mxu0 %v202
      %765 = vmatprep.subr.mxu0 0.0
      %766 = vmatpush1.msra.mxu0 %v203
      %767 = vmatprep.subr.mxu0 0.0
      %768 = vmatpush1.msra.mxu0 %v204
      %769 = vmatprep.subr.mxu0 0.0
      %770 = vmatpush1.msra.mxu0 %v205
      %771 = vmatprep.subr.mxu0 0.0
      %772 = vmatpush1.msra.mxu0 0.0
      %773 = vmatprep.subr.mxu0 0.0
      %774 = vmatpush1.msra.mxu0 0.0
      %775 = vmatprep.subr.mxu0 0.0
      %776 = vmatpush1.msra.mxu0 0.0
      %777 = vmatprep.subr.mxu0 0.0
      %778 = vmatpush1.msra.mxu0 0.0
      %779 = vmatprep.subr.mxu0 0.0
      %780 = vmatpush1.msra.mxu0 0.0
      %781 = vmatprep.subr.mxu0 0.0
      %782 = vmatpush1.msra.mxu0 0.0
      %783 = vmatprep.subr.mxu0 0.0
      %784 = vmatpush1.msra.mxu0 0.0
      %785 = vmatprep.subr.mxu0 0.0
      %786 = vmatpush1.msra.mxu0 0.0
      %787 = vmatprep.subr.mxu0 0.0
      %788 = vmatpush1.msra.mxu0 0.0
      %789 = vmatprep.subr.mxu0 0.0
      %790 = vmatpush1.msra.mxu0 0.0
      %791 = vmatprep.subr.mxu0 0.0
      %792 = vmatpush1.msra.mxu0 0.0
      %793 = vmatprep.subr.mxu0 0.0
      %794 = vmatpush1.msra.mxu0 0.0
      %795 = vmatprep.subr.mxu0 0.0
      %796 = vmatpush1.msra.mxu0 0.0
      %797 = vmatprep.subr.mxu0 0.0
      %798 = vmatpush1.msra.mxu0 0.0
      %799 = vmatprep.subr.mxu0 0.0
      %800 = vmatpush1.msra.mxu0 0.0
      %801 = vmatprep.subr.mxu0 0.0
      %802 = vmatpush1.msra.mxu0 0.0
      %803 = vmatprep.subr.mxu0 0.0
      %804 = vmatpush1.msra.mxu0 0.0
      %805 = vmatprep.subr.mxu0 0.0
      %806 = vmatpush1.msra.mxu0 0.0
      %807 = vmatprep.subr.mxu0 0.0
      %808 = vmatpush1.msra.mxu0 0.0
      %809 = vmatprep.subr.mxu0 0.0
      %810 = vmatpush1.msra.mxu0 0.0
      %811 = vmatprep.subr.mxu0 0.0
      %812 = vmatpush1.msra.mxu0 0.0
      %813 = vmatprep.subr.mxu0 0.0
      %814 = vmatpush1.msra.mxu0 0.0
      %815 = vmatprep.subr.mxu0 0.0
      %816 = vmatpush1.msra.mxu0 0.0
      %817 = vmatprep.subr.mxu0 0.0
      %818 = vmatpush1.msra.mxu0 0.0
      %819 = vmatprep.subr.mxu0 0.0
      %820 = vmatpush1.msra.mxu0 0.0
      %821 = vmatprep.subr.mxu0 0.0
      %822 = vmatpush1.msra.mxu0 0.0
      %823 = vmatprep.subr.mxu0 0.0
      %824 = vmatpush1.msra.mxu0 0.0
      %825 = vmatprep.subr.mxu0 0.0
      %826 = vmatpush1.msra.mxu0 0.0
      %827 = vmatprep.mubr.f32.mxu0 0.0
      %828 = vmatmul.mubr.f32.gmra.mrb[0].mxu0 %v716
      %v829 = vpop.f32.mrb[0].mxu0
      %v830 = vadd.f32 %v714, %v829
      %v831 = vpop.f32.mrb[0].mxu0
      %832 = vmatprep.mubr.f32.mxu0 0.0
      %833 = vmatmul.mubr.f32.gmra.mrb[0].mxu0 %v719
      %v834 = vpop.f32.mrb[0].mxu0
      %v835 = vadd.f32 %v714, %v834
      %v836 = vpop.f32.mrb[0].mxu0
      %837 = vmatprep.mubr.f32.mxu0 0.0
      %838 = vmatmul.mubr.f32.gmra.mrb[0].mxu0 %v722
      %v839 = vpop.f32.mrb[0].mxu0
      %v840 = vadd.f32 %v714, %v839
      %v841 = vpop.f32.mrb[0].mxu0
      %842 = vmatprep.mubr.f32.mxu0 0.0
      %843 = vmatmul.mubr.f32.gmra.mrb[0].mxu0 %v725
      %v844 = vpop.f32.mrb[0].mxu0
      %v845 = vadd.f32 %v714, %v844
      %v846 = vpop.f32.mrb[0].mxu0
      %847 = vmatprep.mubr.f32.mxu0 0.0
      %848 = vmatmul.mubr.f32.gmra.mrb[0].mxu0 %v728
      %v849 = vpop.f32.mrb[0].mxu0
      %v850 = vadd.f32 %v714, %v849
      %v851 = vpop.f32.mrb[0].mxu0
      %852 = vmatprep.mubr.f32.mxu0 0.0
      %853 = vmatmul.mubr.f32.gmra.mrb[0].mxu0 %v731
      %v854 = vpop.f32.mrb[0].mxu0
      %v855 = vadd.f32 %v714, %v854
      %v856 = vpop.f32.mrb[0].mxu0
      %857 = vmatprep.mubr.f32.mxu0 0.0
      %858 = vmatmul.mubr.f32.gmra.mrb[0].mxu0 %v734
      %v859 = vpop.f32.mrb[0].mxu0
      %v860 = vadd.f32 %v714, %v859
      %v861 = vpop.f32.mrb[0].mxu0
      %862 = vmatprep.mubr.f32.mxu0 0.0
      %863 = vmatmul.mubr.f32.gmra.mrb[0].mxu0 %v737
      %v864 = vpop.f32.mrb[0].mxu0
      %v865 = vadd.f32 %v714, %v864
      %v866 = vpop.f32.mrb[0].mxu0
      %867 = vmatprep.mubr.f32.mxu0 0.0
      %868 = vmatmul.mubr.f32.gmra.mrb[0].mxu0 %v740
      %v869 = vpop.f32.mrb[0].mxu0
      %v870 = vadd.f32 %v714, %v869
      %v871 = vpop.f32.mrb[0].mxu0
      %872 = vmatprep.mubr.f32.mxu0 0.0
      %873 = vmatmul.mubr.f32.gmra.mrb[0].mxu0 %v743
      %v874 = vpop.f32.mrb[0].mxu0
      %v875 = vadd.f32 %v714, %v874
      %v876 = vpop.f32.mrb[0].mxu0
      %877 = vmatprep.mubr.f32.mxu0 0.0
      %878 = vmatmul.mubr.f32.gmra.mrb[0].mxu0 %v746
      %v879 = vpop.f32.mrb[0].mxu0
      %v880 = vadd.f32 %v714, %v879
      %v881 = vpop.f32.mrb[0].mxu0
      %882 = vmatprep.mubr.f32.mxu0 0.0
      %883 = vmatmul.mubr.f32.gmra.mrb[0].mxu0 %v749
      %v884 = vpop.f32.mrb[0].mxu0
      %v885 = vadd.f32 %v714, %v884
      %v886 = vpop.f32.mrb[0].mxu0
      %887 = vmatprep.mubr.f32.mxu0 0.0
      %888 = vmatmul.mubr.f32.gmra.mrb[0].mxu0 %v752
      %v889 = vpop.f32.mrb[0].mxu0
      %v890 = vadd.f32 %v714, %v889
      %v891 = vpop.f32.mrb[0].mxu0
      %892 = vmatprep.mubr.f32.mxu0 0.0
      %893 = vmatmul.mubr.f32.gmra.mrb[0].mxu0 %v755
      %v894 = vpop.f32.mrb[0].mxu0
      %v895 = vadd.f32 %v714, %v894
      %v896 = vpop.f32.mrb[0].mxu0
      %897 = vmatprep.mubr.f32.mxu0 0.0
      %898 = vmatmul.mubr.f32.gmra.mrb[0].mxu0 %v758
      %v899 = vpop.f32.mrb[0].mxu0
      %v900 = vadd.f32 %v714, %v899
      %v901 = vpop.f32.mrb[0].mxu0
      %902 = vmatprep.mubr.f32.mxu0 0.0
      %903 = vmatmul.mubr.f32.gmra.mrb[0].mxu0 %v761
      %v904 = vpop.f32.mrb[0].mxu0
      %v905 = vadd.f32 %v714, %v904
      %v906 = vpop.f32.mrb[0].mxu0
      %907 = vdwg.mxu0
      %vm908 = vcmask 64512
      %909 = vst.msk [vmem:[%s172] sm:$0xff] %vm908, %v830
      %910 = vst.msk [vmem:[%s172 + $0x8] sm:$0xff] %vm908, %v835
      %911 = vst.msk [vmem:[%s172 + $0x10] sm:$0xff] %vm908, %v840
      %912 = vst.msk [vmem:[%s172 + $0x18] sm:$0xff] %vm908, %v845
      %913 = vst.msk [vmem:[%s172 + $0x20] sm:$0xff] %vm908, %v850
      %914 = vst.msk [vmem:[%s172 + $0x28] sm:$0xff] %vm908, %v855
      %915 = vst.msk [vmem:[%s172 + $0x30] sm:$0xff] %vm908, %v860
      %916 = vst.msk [vmem:[%s172 + $0x38] sm:$0xff] %vm908, %v865
      %917 = vst.msk [vmem:[%s172 + $0x40] sm:$0xff] %vm908, %v870
      %918 = vst.msk [vmem:[%s172 + $0x48] sm:$0xff] %vm908, %v875
      %919 = vst.msk [vmem:[%s172 + $0x50] sm:$0xff] %vm908, %v880
      %920 = vst.msk [vmem:[%s172 + $0x58] sm:$0xff] %vm908, %v885
      %921 = vst.msk [vmem:[%s172 + $0x60] sm:$0xff] %vm908, %v890
      %922 = vst.msk [vmem:[%s172 + $0x68] sm:$0xff] %vm908, %v895
      %923 = vst.msk [vmem:[%s172 + $0x70] sm:$0xff] %vm908, %v900
      %924 = vst.msk [vmem:[%s172 + $0x78] sm:$0xff] %vm908, %v905
      %s925 = smul.u32 16, %s14
      %p926 = scmp.lt.s32.totalorder %s925, 63
      %s927 = scalar_select %p926, %s925, 63
      %s928 = smul.addr %s927, 8
      %s929 = scalar_lea.vmem %s3, %s928
      // Predicated region
      $region33: #{tpu_custom_call.1} parent=31 // pred_check
        %p930 = pneg %p100
      $region34: #{tpu_custom_call.1} parent=31 // pred_check_branch
        %932 = sbr.rel (%p930) target = $region36
      $region35: #{tpu_custom_call.1} parent=31 // pred_region
        %s933 = smul.u32 16, %s14
      $region36: #{tpu_custom_call.1} parent=31 // pred_fallthru
        _
    $region32: #{tpu_custom_call.1} parent=5 // pred_fallthru
      _
    %p934 = scmp.le.s32.totalorder 2, %s9
    // Predicated region
    $region37: #{tpu_custom_call.1} parent=5 // pred_check
      %p935 = pneg %p934
    $region38: #{tpu_custom_call.1} parent=5 // pred_check_branch
      %937 = sbr.rel (%p935) target = $region40
    $region39: #{tpu_custom_call.1} parent=5 // pred_region
      %s938 = ssub.s32 %s9, 2
      // Predicated region
      $region41: #{tpu_custom_call.1} parent=39 // pred_check
        %p939 = pneg %p106
      $region42: #{tpu_custom_call.1} parent=39 // pred_check_branch
        %941 = sbr.rel (%p939) target = $region44
      $region43: #{tpu_custom_call.1} parent=39 // pred_region
        %s942 = smul.u32 16, %s15
        %p943 = scmp.lt.s32.totalorder %s942, 63
        %s944 = scalar_select %p943, %s942, 63
        %s945 = smul.addr %s944, 8
        %s946 = scalar_lea.vmem %s3, %s945
      $region44: #{tpu_custom_call.1} parent=39 // pred_fallthru
        _
    $region40: #{tpu_custom_call.1} parent=5 // pred_fallthru
      _
  $region6: #{tpu_custom_call.1} parent=0 // loop_footer
    %s13 = sadd.s32 1, %s9
  $region7: #{tpu_custom_call.1} parent=0 // loop_footer_branch
    %8 = sbr.rel target = $region3
  $region8: #{tpu_custom_call.1} parent=0 // loop_exit
    _

</llo_original>
